<compile_context>
chip_gen: v6e
topology: v6e:2x2x1
jax: 0.10.0
libtpu: 0.0.40
codegen_flags: <defaults>
</compile_context>

<pallas_src>
import math
import functools

import jax
import jax.numpy as jnp
from jax.experimental import pallas as pl
from jax.experimental.pallas import tpu as pltpu

LANE = 128                       # per-head column blocks padded to this
SUBLANE = 8
_VMEM_TILE_BUDGET = 24 << 20     # bytes used when picking the batch tile
_VMEM_LIMIT = 48 << 20           # scoped VMEM we request (< v7x's 64 MiB phys)
_PALLAS_MIN_FLOPS = 1 << 22      # below this, plain XLA dot wins


def _round_up(n, m):
    return ((n + m - 1) // m) * m


def _fused_heads_kernel(x_ref, wb_ref, o_ref):
    # x_ref : (TB, D)        bf16 activation tile (streamed over the batch grid)
    # wb_ref: (D + 1, N_pad) bf16 packed [W^T ; b] slab, VMEM-resident
    # o_ref : (TB, N_pad)    f32 output tile (N_pad % 128 == 0 -> unmasked vst)
    d = x_ref.shape[1]
    acc = jnp.dot(x_ref[...], wb_ref[:d, :], preferred_element_type=jnp.float32)
    bias = wb_ref[d:d + 1, :].astype(jnp.float32)           # (1, N_pad)
    o_ref[...] = (acc + bias).astype(o_ref.dtype)


def _pick_batch_tile(B, D, N_pad, in_bytes):
    """Largest batch tile whose double-buffered x/out tiles plus the resident
    weight slab fit in a conservative VMEM budget (re-derived per shape so the
    same code is safe on v5e/v6e 128 MiB and v7x 64 MiB VMEM)."""
    resident = (D + 1) * N_pad * in_bytes
    per_row = 2 * (D * in_bytes + N_pad * 4)      # 2x double-buffered in + out
    tb = (_VMEM_TILE_BUDGET - resident) // max(per_row, 1)
    tb = max(SUBLANE, min(int(tb), 1024, _round_up(B, SUBLANE)))
    return int((tb // SUBLANE) * SUBLANE)


@functools.partial(jax.jit, static_argnames=("n_cats", "use_pallas"))
def _fused_forward(x, wb_pad, n_cats, use_pallas):
    B, D = x.shape
    N_pad = wb_pad.shape[1]
    xh = x.astype(wb_pad.dtype)                  # bf16 inputs, f32 accumulation

    if use_pallas:
        TB = _pick_batch_tile(B, D, N_pad, wb_pad.dtype.itemsize)
        cost = pl.CostEstimate(
            flops=2 * B * D * N_pad,
            transcendentals=0,
            bytes_accessed=(B * D * xh.dtype.itemsize
                            + (D + 1) * N_pad * wb_pad.dtype.itemsize
                            + B * N_pad * 4),
        )
        out = pl.pallas_call(
            _fused_heads_kernel,
            out_shape=jax.ShapeDtypeStruct((B, N_pad), jnp.float32),
            grid=(pl.cdiv(B, TB),),
            in_specs=[
                pl.BlockSpec((TB, D), lambda i: (i, 0)),         # streamed
                pl.BlockSpec((D + 1, N_pad), lambda i: (0, 0)),  # resident
            ],
            out_specs=pl.BlockSpec((TB, N_pad), lambda i: (i, 0)),
            compiler_params=pltpu.CompilerParams(
                dimension_semantics=("parallel",),
                vmem_limit_bytes=_VMEM_LIMIT,
            ),
            cost_estimate=cost,
        )(xh, wb_pad)
    else:
        # Small-shape fallback: custom-call launch + DMA latency would dominate.
        out = (jnp.dot(xh, wb_pad[:D, :], preferred_element_type=jnp.float32)
               + wb_pad[D:D + 1, :].astype(jnp.float32))

    # Per-head slices; every offset is a multiple of 128 -> lane-aligned views.
    outs, off = [], 0
    for n in n_cats:
        outs.append(out[:, off:off + n])
        off += _round_up(n, LANE)
    return outs


class MultiFeaturePredictor:
    """JAX/Pallas port of the PyTorch module.

    heads[i] is an nn.Linear(input_dim, n_cat_i); __call__ returns the list of
    head outputs. All heads are computed by a single fused MXU matmul over a
    pre-packed, per-head-lane-padded [W^T ; b] bf16 slab.
    """

    def __init__(self, input_dim, ls_n_cat_n_embd, key,
                 compute_dtype=jnp.bfloat16):
        self.input_dim = input_dim
        self.n_cats = tuple(n_cat for n_cat, _ in ls_n_cat_n_embd)

        # Per-head f32 parameters (PyTorch nn.Linear layout + default init),
        # kept for the reference check.
        bound = 1.0 / math.sqrt(input_dim)
        self.params = []
        for n_cat, _n_embd in ls_n_cat_n_embd:
            key, kw, kb = jax.random.split(key, 3)
            w = jax.random.uniform(kw, (n_cat, input_dim), jnp.float32,
                                   minval=-bound, maxval=bound)
            b = jax.random.uniform(kb, (n_cat,), jnp.float32,
                                   minval=-bound, maxval=bound)
            self.params.append((w, b))

        # Pack [W^T ; b] once at init. Each head's columns are padded to a
        # 128-lane boundary individually (lane-aligned slice offsets), padding
        # is zero, and the slab is stored in bf16 (halved weight DMA, native
        # MXU rate); accumulation stays f32 in the kernel.
        pad_widths = [_round_up(n, LANE) for n in self.n_cats]
        self.n_pad = sum(pad_widths)
        wb = jnp.zeros((input_dim + 1, self.n_pad), jnp.float32)
        off = 0
        for (w, b), pw in zip(self.params, pad_widths):
            n = w.shape[0]
            wb = wb.at[:input_dim, off:off + n].set(w.T)
            wb = wb.at[input_dim, off:off + n].set(b)
            off += pw
        self.wb_pad = wb.astype(compute_dtype)

    def __call__(self, x, use_pallas=None):
        if use_pallas is None:   # auto: skip the kernel when it is latency-bound
            use_pallas = (2 * x.shape[0] * self.input_dim * self.n_pad
                          >= _PALLAS_MIN_FLOPS)
        return _fused_forward(x, self.wb_pad, self.n_cats, bool(use_pallas))


if __name__ == "__main__":
    key = jax.random.PRNGKey(0)

    B = 8            # batch
    D = 32           # input_dim (hidden)
    ls_n_cat_n_embd = [(5, 16), (7, 16), (3, 16)]   # (n_cat, n_embd) per head

    key, kx = jax.random.split(key)
    x = jax.random.normal(kx, (B, D), dtype=jnp.float32)

    model = MultiFeaturePredictor(D, ls_n_cat_n_embd, key)

    # Force the Pallas path once (the auto heuristic would fall back at this
    # tiny demo size), and also run the auto/fallback path.
    outs_pallas = [jax.block_until_ready(o) for o in model(x, use_pallas=True)]
    outs_auto = [jax.block_until_ready(o) for o in model(x)]

    # Correctness check against plain-JAX f32 reference (per-head nn.Linear).
    # Tolerance is bf16-input level since weights/activations are cast to bf16.
    ok = True
    for (w, b), op, oa, (n_cat, _) in zip(model.params, outs_pallas, outs_auto,
                                          ls_n_cat_n_embd):
        ref = x @ w.T + b
        ok &= op.shape == (B, n_cat) and oa.shape == (B, n_cat)
        ok &= bool(jnp.allclose(op, ref, atol=2e-2, rtol=2e-2))
        ok &= bool(jnp.allclose(oa, ref, atol=2e-2, rtol=2e-2))
    assert ok, "mismatch vs reference"

    print("KERNEL_OK")
</pallas_src>

<mosaic_0001>
module attributes {stable_mosaic.version = 11 : i64} {
  func.func @_fused_heads_kernel(%arg0: i32, %arg1: memref<8x32xbf16, #tpu.memory_space<vmem>>, %arg2: memref<33x384xbf16, #tpu.memory_space<vmem>>, %arg3: memref<8x384xf32, #tpu.memory_space<vmem>>) attributes {dimension_semantics = [#tpu.dimension_semantics<parallel>], iteration_bounds = array<i64: 1>, scalar_prefetch = 0 : i64, scratch_operands = 0 : i64, tpu.core_type = #tpu.core_type<tc>, window_params = [{transform_indices = @transform_0, window_bounds = array<i64: 8, 32>}, {pipeline_mode = #tpu.pipeline_mode<synchronous>, transform_indices = @transform_1, window_bounds = array<i64: 33, 384>}, {transform_indices = @transform_2, window_bounds = array<i64: 8, 384>}]} {
    %c0 = arith.constant 0 : index
    %c0_0 = arith.constant 0 : index
    %0 = vector.load %arg1[%c0, %c0_0] : memref<8x32xbf16, #tpu.memory_space<vmem>>, vector<8x32xbf16>
    %c0_1 = arith.constant 0 : index
    %c0_2 = arith.constant 0 : index
    %1 = vector.load %arg2[%c0_1, %c0_2] : memref<33x384xbf16, #tpu.memory_space<vmem>>, vector<32x384xbf16>
    %cst = arith.constant dense<0.000000e+00> : vector<8x384xf32>
    %2 = tpu.matmul %0, %1, %cst {dimension_numbers = #tpu.dot_dimension_numbers<[1], [0], [0], [1], [0, 0, 1, 1], [], []>} : vector<8x32xbf16>, vector<32x384xbf16>, vector<8x384xf32> -> vector<8x384xf32>
    %c32 = arith.constant 32 : index
    %c0_3 = arith.constant 0 : index
    %3 = vector.load %arg2[%c32, %c0_3] : memref<33x384xbf16, #tpu.memory_space<vmem>>, vector<1x384xbf16>
    %4 = arith.extf %3 : vector<1x384xbf16> to vector<1x384xf32>
    %5 = vector.broadcast %4 : vector<1x384xf32> to vector<8x384xf32>
    %6 = arith.addf %2, %5 : vector<8x384xf32>
    %c0_4 = arith.constant 0 : index
    %c0_5 = arith.constant 0 : index
    %7 = vector.load %arg3[%c0_4, %c0_5] : memref<8x384xf32, #tpu.memory_space<vmem>>, vector<8x384xf32>
    tpu.vector_store %arg3[%c0_4, %c0_5], %6 {strides = array<i32>} : memref<8x384xf32, #tpu.memory_space<vmem>>, vector<8x384xf32>,
    return
  }
  func.func @transform_0(%arg0: i32) -> (i32, i32) {
    %c0_i32 = arith.constant 0 : i32
    %c0_i32_0 = arith.constant 0 : i32
    return %arg0, %c0_i32 : i32, i32
  }
  func.func @transform_1(%arg0: i32) -> (i32, i32) {
    %c0_i32 = arith.constant 0 : i32
    %c0_i32_0 = arith.constant 0 : i32
    %c0_i32_1 = arith.constant 0 : i32
    return %c0_i32, %c0_i32_0 : i32, i32
  }
  func.func @transform_2(%arg0: i32) -> (i32, i32) {
    %c0_i32 = arith.constant 0 : i32
    %c0_i32_0 = arith.constant 0 : i32
    return %arg0, %c0_i32 : i32, i32
  }
}

</mosaic_0001>

<llo_original>
// kernel: _fused_forward.1
$region0: #{_fused_forward.1}
  #allocation0 [shape = 'u32[]', space=smem, size = 0x4, offset = 0x4, fixed_abs, tag = 'smem constant byte address 0x4 - core index']
  #allocation1 [shape = 'u32[144,128]{1,0:T(1,128)}', space=vmem, size = 0x12000, scoped, tag = 'internal scratch']
  %s0 = inlined_call_operand.vmem [shape: bf16[8,32], index: 0, kind: input, shape index: {}]
  %s1 = inlined_call_operand.hbm [shape: bf16[33,384], index: 1, kind: input, shape index: {}]
  %s2 = inlined_call_operand.vmem [shape: f32[8,384], index: 2, kind: output, shape index: {}]
  %s3 = sld [smem:[#allocation0]]
  $region22: #{_fused_forward.1} parent=0
    _
  %s5 = ssub.s32 1, %s3
  %s6 = scalar_select 0, %s5, %s3
  $region1: #{_fused_forward.1} parent=0
    #allocation2 [shape = 'u8[30720]{0}', space=vmem, size = 0x7800, scoped, tag = 'input window, operand 1, single buffered']
    #allocation3 [shape = 's32[1]{0}', space=sflag, size = 0x4, scoped, tag = 'scoped memory for _fused_forward.1']
    %7 = vsyncpa [#allocation3], 0
    // Predicated region
    $region2: #{_fused_forward.1} parent=1 // pred_check
      _
    $region3: #{_fused_forward.1} parent=1 // pred_check_branch
      %9 = sbr.rel (0) target = $region5
    $region4: #{_fused_forward.1} parent=1 // pred_region
      _
    $region5: #{_fused_forward.1} parent=1 // pred_fallthru
      _
    // Predicated region
    $region6: #{_fused_forward.1} parent=1 // pred_check
      _
    $region7: #{_fused_forward.1} parent=1 // pred_check_branch
      %11 = sbr.rel (0) target = $region9
    $region8: #{_fused_forward.1} parent=1 // pred_region
      %s13 = ssub.s32 960, 960
      %14 = vsyncadd [#allocation3], %s13
      %s15 = sshll.u32 [#allocation2], 4
      %s16 = int_to_ptr.vmem [resolvable:$true] %s15
      %21 = dma.hbm_to_vmem [thread:$0]  %s1, 960, %s16, [#allocation3], 192, 192, 12
    $region9: #{_fused_forward.1} parent=1 // pred_fallthru
      _
    // Predicated region
    $region10: #{_fused_forward.1} parent=1 // pred_check
      _
    $region11: #{_fused_forward.1} parent=1 // pred_check_branch
      %23 = sbr.rel (0) target = $region13
    $region12: #{_fused_forward.1} parent=1 // pred_region
      %24 = dma.done [#allocation3], 960
    $region13: #{_fused_forward.1} parent=1 // pred_fallthru
      _
    %v26 = vld [vmem:[%s0] sm:$0xf]
    %v27 = vld [vmem:[#allocation2] sm:$0xff]
    %v28 = vld [vmem:[#allocation2 + $0x8] sm:$0xf]
    %v29 = vld [vmem:[#allocation2 + $0xc] sm:$0xff]
    %v30 = vld [vmem:[#allocation2 + $0x14] sm:$0xf]
    %v31 = vld [vmem:[#allocation2 + $0x18] sm:$0xff]
    %v32 = vld [vmem:[#allocation2 + $0x20] sm:$0xf]
    %v33 = vld [vmem:[#allocation2 + $0x24] sm:$0xff]
    %v34 = vld [vmem:[#allocation2 + $0x2c] sm:$0xf]
    %v35 = vld [vmem:[#allocation2 + $0x30] sm:$0x11]
    %v36 = vld [vmem:[#allocation2 + $0x38] sm:$0x1]
    %v37 = vunpack.c.l.bf16 %v35
    %v38 = vunpack.c.h.bf16 %v35
    %v39 = vunpack.c.l.bf16 %v36
    %v40 = vlaneseq
    %v41 = vshrl.u32 %v40, 7
    %v42 = vsub.s32 0, %v41
    %v43 = vrot.slane %v37, %v42
    %v44 = vlaneseq
    %v45 = vshrl.u32 %v44, 7
    %v46 = vsub.s32 0, %v45
    %v47 = vrot.slane %v38, %v46
    %v48 = vlaneseq
    %v49 = vshrl.u32 %v48, 7
    %v50 = vsub.s32 0, %v49
    %v51 = vrot.slane %v39, %v50
    %v60 = vunpack.c.l.b16 %v27
    %v61 = vunpack.c.h.b16 %v27
    %v62 = vunpack.c.l.b16 %v28
    %v63 = vunpack.c.l.b16 %v29
    %v64 = vunpack.c.h.b16 %v29
    %v65 = vunpack.c.l.b16 %v30
    %v66 = vunpack.c.l.b16 %v31
    %v67 = vunpack.c.h.b16 %v31
    %v68 = vunpack.c.l.b16 %v32
    %v69 = vunpack.c.l.b16 %v33
    %v70 = vunpack.c.h.b16 %v33
    %v71 = vunpack.c.l.b16 %v34
    %v72 = vpack.c.b16 %v63, %v60
    %v73 = vpack.c.b16 %v64, %v61
    %v74 = vpack.c.b16 %v65, %v62
    %v75 = vpack.c.b16 %v69, %v66
    %v76 = vpack.c.b16 %v70, %v67
    %v77 = vpack.c.b16 %v71, %v68
    %vm84 = vcmask 261120
    %v86 = vsel %vm84, %v26, 0
    %88 = vmatprep.subr.bf16.mxu0 0
    %89 = vmatpush1.bf16.msra.mxu0 0
    %90 = vmatprep.subr.bf16.mxu0 0
    %91 = vmatpush1.bf16.msra.mxu0 0
    %92 = vmatprep.subr.bf16.mxu0 0
    %93 = vmatpush1.bf16.msra.mxu0 0
    %94 = vmatprep.subr.bf16.mxu0 0
    %95 = vmatpush1.bf16.msra.mxu0 0
    %96 = vmatprep.subr.bf16.mxu0 0
    %97 = vmatpush1.bf16.msra.mxu0 0
    %98 = vmatprep.subr.bf16.mxu0 0
    %99 = vmatpush1.bf16.msra.mxu0 0
    %100 = vmatprep.subr.bf16.mxu0 %v76
    %101 = vmatpush1.bf16.msra.mxu0 %v75
    %102 = vmatprep.subr.bf16.mxu0 %v73
    %103 = vmatpush1.bf16.msra.mxu0 %v72
    %104 = vmatprep.subr.bf16.mxu0 0
    %105 = vmatpush2.bf16.msra.mxu0 0
    %106 = vmatprep.subr.bf16.mxu0 0
    %107 = vmatpush2.bf16.msra.mxu0 0
    %108 = vmatprep.subr.bf16.mxu0 0
    %109 = vmatpush2.bf16.msra.mxu0 0
    %110 = vmatprep.subr.bf16.mxu0 0
    %111 = vmatpush2.bf16.msra.mxu0 0
    %112 = vmatprep.subr.bf16.mxu0 0
    %113 = vmatpush2.bf16.msra.mxu0 0
    %114 = vmatprep.subr.bf16.mxu0 0
    %115 = vmatpush2.bf16.msra.mxu0 0
    %116 = vmatprep.subr.bf16.mxu0 0
    %117 = vmatpush2.bf16.msra.mxu0 0
    %118 = vmatprep.subr.bf16.mxu0 0
    %119 = vmatpush2.bf16.msra.mxu0 0
    %120 = vmatprep.mubr.bf16.mxu0 0
    %121 = vmatmul.mubr.bf16.gmra.mxu0 %v86
    %v122 = vpop.f32.mrf.mxu0
    %v123 = vadd.f32 %v43, %v122
    %v124 = vpop.f32.mrf.mxu0
    %v125 = vadd.f32 %v47, %v124
    %v126 = vpop.f32.mrf.mxu0
    %v127 = vpop.f32.mrf.mxu0
    %128 = vdwg.mxu0
    %129 = vmatprep.subr.bf16.mxu0 0
    %130 = vmatpush1.bf16.msra.mxu0 0
    %131 = vmatprep.subr.bf16.mxu0 0
    %132 = vmatpush1.bf16.msra.mxu0 0
    %133 = vmatprep.subr.bf16.mxu0 0
    %134 = vmatpush1.bf16.msra.mxu0 0
    %135 = vmatprep.subr.bf16.mxu0 0
    %136 = vmatpush1.bf16.msra.mxu0 0
    %137 = vmatprep.subr.bf16.mxu0 0
    %138 = vmatpush1.bf16.msra.mxu0 0
    %139 = vmatprep.subr.bf16.mxu0 0
    %140 = vmatpush1.bf16.msra.mxu0 0
    %141 = vmatprep.subr.bf16.mxu0 0
    %142 = vmatpush1.bf16.msra.mxu0 %v77
    %143 = vmatprep.subr.bf16.mxu0 0
    %144 = vmatpush1.bf16.msra.mxu0 %v74
    %145 = vmatprep.subr.bf16.mxu0 0
    %146 = vmatpush2.bf16.msra.mxu0 0
    %147 = vmatprep.subr.bf16.mxu0 0
    %148 = vmatpush2.bf16.msra.mxu0 0
    %149 = vmatprep.subr.bf16.mxu0 0
    %150 = vmatpush2.bf16.msra.mxu0 0
    %151 = vmatprep.subr.bf16.mxu0 0
    %152 = vmatpush2.bf16.msra.mxu0 0
    %153 = vmatprep.subr.bf16.mxu0 0
    %154 = vmatpush2.bf16.msra.mxu0 0
    %155 = vmatprep.subr.bf16.mxu0 0
    %156 = vmatpush2.bf16.msra.mxu0 0
    %157 = vmatprep.subr.bf16.mxu0 0
    %158 = vmatpush2.bf16.msra.mxu0 0
    %159 = vmatprep.subr.bf16.mxu0 0
    %160 = vmatpush2.bf16.msra.mxu0 0
    %161 = vmatprep.mubr.bf16.mxu0 0
    %162 = vmatmul.mubr.bf16.gmra.mxu0 %v86
    %v163 = vpop.f32.mrf.mxu0
    %v164 = vadd.f32 %v51, %v163
    %v165 = vpop.f32.mrf.mxu0
    %v166 = vpop.f32.mrf.mxu0
    %v167 = vpop.f32.mrf.mxu0
    %168 = vdwg.mxu0
    %169 = vst [vmem:[%s2] sm:$0xff] %v123
    %170 = vst [vmem:[%s2 + $0x8] sm:$0xff] %v125
    %171 = vst [vmem:[%s2 + $0x10] sm:$0xff] %v164
    // Predicated region
    $region14: #{_fused_forward.1} parent=1 // pred_check
      _
    $region15: #{_fused_forward.1} parent=1 // pred_check_branch
      %173 = sbr.rel (0) target = $region17
    $region16: #{_fused_forward.1} parent=1 // pred_region
      _
    $region17: #{_fused_forward.1} parent=1 // pred_fallthru
      _
    // Predicated region
    $region18: #{_fused_forward.1} parent=1 // pred_check
      _
    $region19: #{_fused_forward.1} parent=1 // pred_check_branch
      %175 = sbr.rel (0) target = $region21
    $region20: #{_fused_forward.1} parent=1 // pred_region
      _
    $region21: #{_fused_forward.1} parent=1 // pred_fallthru
      _
    %176 = vsyncpa [#allocation3], 1

</llo_original>
